<compile_context>
chip_gen: v6e
topology: v6e:2x2x1
jax: 0.10.0
libtpu: 0.0.40
codegen_flags: <defaults>
</compile_context>

<pallas_src>
import jax
import jax.numpy as jnp
from jax.experimental import pallas as pl
from jax.experimental.pallas import tpu as pltpu

LANE = 128            # TPU lane width; pad the (narrow) action dim up to this
OBS_ALIGN = 16        # bf16 sublane packing -> keep the K dim a native tile
MAX_TB = 512          # batch-tile cap (per-step overhead amortized ~85% of roofline)
MIN_KERNEL_BATCH = 16 # below this, plain-XLA fast path


def _round_up(n, m):
    return ((n + m - 1) // m) * m


# ----------------------------------------------------------------------------
# Kernel
# ----------------------------------------------------------------------------
def dqn_forward_kernel(x_ref, w1_ref, b1_ref, w2_ref, b2_ref, w3_ref, b3_ref,
                       out_ref):
    # x arrives as f32 (TB, obs_p); cast to bf16 for the MXU.  All matmuls
    # accumulate in f32; bias+ReLU epilogue stays in f32 (v5e-safe); the final
    # store is bf16 to halve the dominant output HBM stream.
    x = x_ref[...].astype(jnp.bfloat16)

    h1 = jnp.dot(x, w1_ref[...], preferred_element_type=jnp.float32)
    h1 = jnp.maximum(h1 + b1_ref[...], 0.0)

    h2 = jnp.dot(h1.astype(jnp.bfloat16), w2_ref[...],
                 preferred_element_type=jnp.float32)
    h2 = jnp.maximum(h2 + b2_ref[...], 0.0)

    out = jnp.dot(h2.astype(jnp.bfloat16), w3_ref[...],
                  preferred_element_type=jnp.float32)
    out_ref[...] = (out + b3_ref[...]).astype(out_ref.dtype)


# ----------------------------------------------------------------------------
# One-time parameter preparation (hoisted out of the per-call wrapper)
# ----------------------------------------------------------------------------
def prepare_dqn_params(params):
    """Pad + cast the DQN params once; reuse the result for every forward."""
    w1, b1 = params["w1"], params["b1"]
    w2, b2 = params["w2"], params["b2"]
    w3, b3 = params["w3"], params["b3"]

    n_obs, hidden = w1.shape
    n_actions = w3.shape[1]
    assert hidden % LANE == 0, (
        f"hidden={hidden} must be a multiple of {LANE} for lane-aligned MXU tiles")
    assert w2.shape == (hidden, hidden) and w3.shape[0] == hidden

    obs_p = _round_up(max(n_obs, OBS_ALIGN), OBS_ALIGN)     # 4 -> 16
    act_p = _round_up(max(n_actions, LANE), LANE)           # 2 -> 128

    w1_p = jnp.pad(w1, ((0, obs_p - n_obs), (0, 0))).astype(jnp.bfloat16)
    w2_p = w2.astype(jnp.bfloat16)
    w3_p = jnp.pad(w3, ((0, 0), (0, act_p - n_actions))).astype(jnp.bfloat16)

    b1_p = jnp.reshape(b1, (1, hidden)).astype(jnp.float32)
    b2_p = jnp.reshape(b2, (1, hidden)).astype(jnp.float32)
    b3_p = jnp.pad(jnp.reshape(b3, (1, n_actions)),
                   ((0, 0), (0, act_p - n_actions))).astype(jnp.float32)

    return {
        "_prepared": True,
        "n_obs": n_obs, "n_actions": n_actions,
        "obs_p": obs_p, "act_p": act_p, "hidden": hidden,
        "w1": w1_p, "b1": b1_p,
        "w2": w2_p, "b2": b2_p,
        "w3": w3_p, "b3": b3_p,
    }


# ----------------------------------------------------------------------------
# Forward wrapper
# ----------------------------------------------------------------------------
def _choose_tb(B):
    # Aim for >= 2 grid steps when possible (lets the "parallel" batch axis
    # shard across v7x's two TensorCores); cap the tile to amortize per-step
    # overhead at large B.  Always a multiple of 16 (bf16 sublane packing).
    tb = _round_up((B + 1) // 2, 16)
    return max(16, min(MAX_TB, tb))


def dqn_forward(x, params, *, block_batch=None):
    """x: (B, n_observations) float32.  params: raw or prepared param dict.

    Returns (B, n_actions) float32 Q-values (same semantics as the PyTorch
    DQN.forward: relu(l1(x)) -> relu(l2) -> l3).
    """
    p = params if params.get("_prepared", False) else prepare_dqn_params(params)

    B, n_obs = x.shape
    assert n_obs == p["n_obs"], f"expected {p['n_obs']} observations, got {n_obs}"
    hidden, obs_p, act_p, n_actions = p["hidden"], p["obs_p"], p["act_p"], p["n_actions"]

    # --- tiny-batch fast path (e.g. single-state action selection) -----------
    if B < MIN_KERNEL_BATCH:
        xb = jnp.pad(x, ((0, 0), (0, obs_p - n_obs))).astype(jnp.bfloat16)
        h1 = jax.nn.relu(jnp.dot(xb, p["w1"],
                                 preferred_element_type=jnp.float32) + p["b1"])
        h2 = jax.nn.relu(jnp.dot(h1.astype(jnp.bfloat16), p["w2"],
                                 preferred_element_type=jnp.float32) + p["b2"])
        out = jnp.dot(h2.astype(jnp.bfloat16), p["w3"],
                      preferred_element_type=jnp.float32) + p["b3"]
        return out[:, :n_actions]

    # --- Pallas path ---------------------------------------------------------
    if block_batch is not None:
        assert block_batch % 16 == 0, "block_batch must be a multiple of 16"
        TB = block_batch
    else:
        TB = _choose_tb(B)
    B_p = _round_up(B, TB)

    x_p = x
    if B_p != B or obs_p != n_obs:
        # Cheap: pads only the batch remainder and 4->16 obs lanes, stays f32.
        x_p = jnp.pad(x, ((0, B_p - B), (0, obs_p - n_obs)))

    grid = (B_p // TB,)

    out = pl.pallas_call(
        dqn_forward_kernel,
        out_shape=jax.ShapeDtypeStruct((B_p, act_p), jnp.bfloat16),
        grid=grid,
        in_specs=[
            # batch-tiled activation (f32, narrow obs dim = full array dim)
            pl.BlockSpec((TB, obs_p), lambda i: (i, 0)),
            # weights / biases: constant index maps -> resident in VMEM
            pl.BlockSpec((obs_p, hidden), lambda i: (0, 0)),
            pl.BlockSpec((1, hidden), lambda i: (0, 0)),
            pl.BlockSpec((hidden, hidden), lambda i: (0, 0)),
            pl.BlockSpec((1, hidden), lambda i: (0, 0)),
            pl.BlockSpec((hidden, act_p), lambda i: (0, 0)),
            pl.BlockSpec((1, act_p), lambda i: (0, 0)),
        ],
        out_specs=pl.BlockSpec((TB, act_p), lambda i: (i, 0)),
        compiler_params=pltpu.CompilerParams(
            dimension_semantics=("parallel",)),
    )(x_p, p["w1"], p["b1"], p["w2"], p["b2"], p["w3"], p["b3"])

    # Slice the padded, lane-dense bf16 output back to logical shape, f32.
    return out[:B, :n_actions].astype(jnp.float32)


# ----------------------------------------------------------------------------
# Init + references
# ----------------------------------------------------------------------------
def init_dqn_params(key, n_observations, n_actions, hidden=128):
    """Deterministic init mimicking PyTorch nn.Linear default:
    U(-1/sqrt(fan_in), 1/sqrt(fan_in)) for both weight and bias."""
    keys = jax.random.split(key, 6)

    def linear(kw, kb, fan_in, fan_out):
        bound = 1.0 / jnp.sqrt(jnp.float32(fan_in))
        w = jax.random.uniform(kw, (fan_in, fan_out), jnp.float32,
                               minval=-bound, maxval=bound)
        b = jax.random.uniform(kb, (1, fan_out), jnp.float32,
                               minval=-bound, maxval=bound)
        return w, b

    w1, b1 = linear(keys[0], keys[1], n_observations, hidden)
    w2, b2 = linear(keys[2], keys[3], hidden, hidden)
    w3, b3 = linear(keys[4], keys[5], hidden, n_actions)
    return {"w1": w1, "b1": b1, "w2": w2, "b2": b2, "w3": w3, "b3": b3}


def dqn_forward_ref_f32(x, p):
    h1 = jax.nn.relu(x @ p["w1"] + p["b1"])
    h2 = jax.nn.relu(h1 @ p["w2"] + p["b2"])
    return h2 @ p["w3"] + p["b3"]


def dqn_forward_ref_bf16(x, p):
    # Emulates the kernel numerics: bf16 operands / f32 accumulation,
    # f32 epilogue, bf16 output store.
    bf = lambda a: a.astype(jnp.bfloat16)
    h1 = jax.nn.relu(jnp.dot(bf(x), bf(p["w1"]),
                             preferred_element_type=jnp.float32) + p["b1"])
    h2 = jax.nn.relu(jnp.dot(bf(h1), bf(p["w2"]),
                             preferred_element_type=jnp.float32) + p["b2"])
    out = jnp.dot(bf(h2), bf(p["w3"]),
                  preferred_element_type=jnp.float32) + p["b3"]
    return out.astype(jnp.bfloat16).astype(jnp.float32)


# TODO(synk): ReplayMemory, epsilon-greedy select_action, and the optimizer are
# host-side Python/training logic with no Pallas forward-pass equivalent.

if __name__ == "__main__":
    key = jax.random.PRNGKey(0)
    k_param, k_x = jax.random.split(key)

    # CartPole-like sizes: 4 observations, 2 actions; DQN training batch 128.
    n_observations, n_actions, batch = 4, 2, 128
    raw_params = init_dqn_params(k_param, n_observations, n_actions)
    params = prepare_dqn_params(raw_params)   # one-time pad/cast, reused below
    x = jax.random.normal(k_x, (batch, n_observations), jnp.float32)

    # Pallas path (training-batch forward).
    out = dqn_forward(x, params)
    jax.block_until_ready(out)
    assert out.shape == (batch, n_actions)
    assert out.dtype == jnp.float32

    # Tight check vs. bf16-operand reference (matches kernel numerics).
    ref_bf16 = dqn_forward_ref_bf16(x, raw_params)
    assert jnp.allclose(out, ref_bf16, atol=2e-3, rtol=2e-3)

    # Looser sanity check vs. the full-f32 PyTorch-equivalent forward.
    ref_f32 = dqn_forward_ref_f32(x, raw_params)
    assert jnp.allclose(out, ref_f32, atol=5e-2, rtol=5e-2)

    # Small-batch fast path (single-state greedy action selection).
    out1 = dqn_forward(x[:1], params)
    jax.block_until_ready(out1)
    assert out1.shape == (1, n_actions)
    assert jnp.allclose(out1, ref_f32[:1], atol=5e-2, rtol=5e-2)

    print("KERNEL_OK")
</pallas_src>

<mosaic_0001>
module attributes {stable_mosaic.version = 11 : i64} {
  func.func @dqn_forward_kernel(%arg0: i32, %arg1: memref<64x16xf32, #tpu.memory_space<vmem>>, %arg2: memref<16x128xbf16, #tpu.memory_space<vmem>>, %arg3: memref<1x128xf32, #tpu.memory_space<vmem>>, %arg4: memref<128x128xbf16, #tpu.memory_space<vmem>>, %arg5: memref<1x128xf32, #tpu.memory_space<vmem>>, %arg6: memref<128x128xbf16, #tpu.memory_space<vmem>>, %arg7: memref<1x128xf32, #tpu.memory_space<vmem>>, %arg8: memref<64x128xbf16, #tpu.memory_space<vmem>>) attributes {dimension_semantics = [#tpu.dimension_semantics<parallel>], iteration_bounds = array<i64: 2>, scalar_prefetch = 0 : i64, scratch_operands = 0 : i64, tpu.core_type = #tpu.core_type<tc>, window_params = [{transform_indices = @transform_0, window_bounds = array<i64: 64, 16>}, {pipeline_mode = #tpu.pipeline_mode<synchronous>, transform_indices = @transform_1, window_bounds = array<i64: 16, 128>}, {pipeline_mode = #tpu.pipeline_mode<synchronous>, transform_indices = @transform_2, window_bounds = array<i64: 1, 128>}, {pipeline_mode = #tpu.pipeline_mode<synchronous>, transform_indices = @transform_3, window_bounds = array<i64: 128, 128>}, {pipeline_mode = #tpu.pipeline_mode<synchronous>, transform_indices = @transform_4, window_bounds = array<i64: 1, 128>}, {pipeline_mode = #tpu.pipeline_mode<synchronous>, transform_indices = @transform_5, window_bounds = array<i64: 128, 128>}, {pipeline_mode = #tpu.pipeline_mode<synchronous>, transform_indices = @transform_6, window_bounds = array<i64: 1, 128>}, {transform_indices = @transform_7, window_bounds = array<i64: 64, 128>}]} {
    %c0 = arith.constant 0 : index
    %c0_0 = arith.constant 0 : index
    %0 = vector.load %arg1[%c0, %c0_0] : memref<64x16xf32, #tpu.memory_space<vmem>>, vector<64x16xf32>
    %1 = arith.truncf %0 : vector<64x16xf32> to vector<64x16xbf16>
    %c0_1 = arith.constant 0 : index
    %c0_2 = arith.constant 0 : index
    %2 = vector.load %arg2[%c0_1, %c0_2] : memref<16x128xbf16, #tpu.memory_space<vmem>>, vector<16x128xbf16>
    %cst = arith.constant dense<0.000000e+00> : vector<64x128xf32>
    %3 = tpu.matmul %1, %2, %cst {dimension_numbers = #tpu.dot_dimension_numbers<[1], [0], [0], [1], [0, 0, 1, 1], [], []>} : vector<64x16xbf16>, vector<16x128xbf16>, vector<64x128xf32> -> vector<64x128xf32>
    %c0_3 = arith.constant 0 : index
    %c0_4 = arith.constant 0 : index
    %4 = vector.load %arg3[%c0_3, %c0_4] : memref<1x128xf32, #tpu.memory_space<vmem>>, vector<1x128xf32>
    %5 = vector.broadcast %4 : vector<1x128xf32> to vector<64x128xf32>
    %6 = arith.addf %3, %5 : vector<64x128xf32>
    %cst_5 = arith.constant 0.000000e+00 : f32
    %7 = vector.broadcast %cst_5 : f32 to vector<64x128xf32>
    %8 = arith.maximumf %6, %7 : vector<64x128xf32>
    %9 = arith.truncf %8 : vector<64x128xf32> to vector<64x128xbf16>
    %c0_6 = arith.constant 0 : index
    %c0_7 = arith.constant 0 : index
    %10 = vector.load %arg4[%c0_6, %c0_7] : memref<128x128xbf16, #tpu.memory_space<vmem>>, vector<128x128xbf16>
    %cst_8 = arith.constant dense<0.000000e+00> : vector<64x128xf32>
    %11 = tpu.matmul %9, %10, %cst_8 {dimension_numbers = #tpu.dot_dimension_numbers<[1], [0], [0], [1], [0, 0, 1, 1], [], []>} : vector<64x128xbf16>, vector<128x128xbf16>, vector<64x128xf32> -> vector<64x128xf32>
    %c0_9 = arith.constant 0 : index
    %c0_10 = arith.constant 0 : index
    %12 = vector.load %arg5[%c0_9, %c0_10] : memref<1x128xf32, #tpu.memory_space<vmem>>, vector<1x128xf32>
    %13 = vector.broadcast %12 : vector<1x128xf32> to vector<64x128xf32>
    %14 = arith.addf %11, %13 : vector<64x128xf32>
    %cst_11 = arith.constant 0.000000e+00 : f32
    %15 = vector.broadcast %cst_11 : f32 to vector<64x128xf32>
    %16 = arith.maximumf %14, %15 : vector<64x128xf32>
    %17 = arith.truncf %16 : vector<64x128xf32> to vector<64x128xbf16>
    %c0_12 = arith.constant 0 : index
    %c0_13 = arith.constant 0 : index
    %18 = vector.load %arg6[%c0_12, %c0_13] : memref<128x128xbf16, #tpu.memory_space<vmem>>, vector<128x128xbf16>
    %cst_14 = arith.constant dense<0.000000e+00> : vector<64x128xf32>
    %19 = tpu.matmul %17, %18, %cst_14 {dimension_numbers = #tpu.dot_dimension_numbers<[1], [0], [0], [1], [0, 0, 1, 1], [], []>} : vector<64x128xbf16>, vector<128x128xbf16>, vector<64x128xf32> -> vector<64x128xf32>
    %c0_15 = arith.constant 0 : index
    %c0_16 = arith.constant 0 : index
    %20 = vector.load %arg7[%c0_15, %c0_16] : memref<1x128xf32, #tpu.memory_space<vmem>>, vector<1x128xf32>
    %21 = vector.broadcast %20 : vector<1x128xf32> to vector<64x128xf32>
    %22 = arith.addf %19, %21 : vector<64x128xf32>
    %23 = arith.truncf %22 : vector<64x128xf32> to vector<64x128xbf16>
    %c0_17 = arith.constant 0 : index
    %c0_18 = arith.constant 0 : index
    %24 = vector.load %arg8[%c0_17, %c0_18] : memref<64x128xbf16, #tpu.memory_space<vmem>>, vector<64x128xbf16>
    tpu.vector_store %arg8[%c0_17, %c0_18], %23 {strides = array<i32>} : memref<64x128xbf16, #tpu.memory_space<vmem>>, vector<64x128xbf16>,
    return
  }
  func.func @transform_0(%arg0: i32) -> (i32, i32) {
    %c0_i32 = arith.constant 0 : i32
    %c0_i32_0 = arith.constant 0 : i32
    return %arg0, %c0_i32 : i32, i32
  }
  func.func @transform_1(%arg0: i32) -> (i32, i32) {
    %c0_i32 = arith.constant 0 : i32
    %c0_i32_0 = arith.constant 0 : i32
    %c0_i32_1 = arith.constant 0 : i32
    return %c0_i32, %c0_i32_0 : i32, i32
  }
  func.func @transform_2(%arg0: i32) -> (i32, i32) {
    %c0_i32 = arith.constant 0 : i32
    %c0_i32_0 = arith.constant 0 : i32
    %c0_i32_1 = arith.constant 0 : i32
    return %c0_i32, %c0_i32_0 : i32, i32
  }
  func.func @transform_3(%arg0: i32) -> (i32, i32) {
    %c0_i32 = arith.constant 0 : i32
    %c0_i32_0 = arith.constant 0 : i32
    %c0_i32_1 = arith.constant 0 : i32
    return %c0_i32, %c0_i32_0 : i32, i32
  }
  func.func @transform_4(%arg0: i32) -> (i32, i32) {
    %c0_i32 = arith.constant 0 : i32
    %c0_i32_0 = arith.constant 0 : i32
    %c0_i32_1 = arith.constant 0 : i32
    return %c0_i32, %c0_i32_0 : i32, i32
  }
  func.func @transform_5(%arg0: i32) -> (i32, i32) {
    %c0_i32 = arith.constant 0 : i32
    %c0_i32_0 = arith.constant 0 : i32
    %c0_i32_1 = arith.constant 0 : i32
    return %c0_i32, %c0_i32_0 : i32, i32
  }
  func.func @transform_6(%arg0: i32) -> (i32, i32) {
    %c0_i32 = arith.constant 0 : i32
    %c0_i32_0 = arith.constant 0 : i32
    %c0_i32_1 = arith.constant 0 : i32
    return %c0_i32, %c0_i32_0 : i32, i32
  }
  func.func @transform_7(%arg0: i32) -> (i32, i32) {
    %c0_i32 = arith.constant 0 : i32
    %c0_i32_0 = arith.constant 0 : i32
    return %arg0, %c0_i32 : i32, i32
  }
}

</mosaic_0001>

<llo_original>
// kernel: tpu_custom_call.1
$region0: #{tpu_custom_call.1}
  #allocation0 [shape = 'u32[]', space=smem, size = 0x4, offset = 0x4, fixed_abs, tag = 'smem constant byte address 0x4 - core index']
  #allocation1 [shape = 'u32[144,128]{1,0:T(1,128)}', space=vmem, size = 0x12000, scoped, tag = 'internal scratch']
  %s0 = inlined_call_operand.vmem [shape: f32[128,16], index: 0, kind: input, shape index: {}]
  %s1 = inlined_call_operand.vmem [shape: bf16[16,128], index: 1, kind: input, shape index: {}]
  %s2 = inlined_call_operand.vmem [shape: f32[1,128], index: 2, kind: input, shape index: {}]
  %s3 = inlined_call_operand.vmem [shape: bf16[128,128], index: 3, kind: input, shape index: {}]
  %s4 = inlined_call_operand.vmem [shape: f32[1,128], index: 4, kind: input, shape index: {}]
  %s5 = inlined_call_operand.vmem [shape: bf16[128,128], index: 5, kind: input, shape index: {}]
  %s6 = inlined_call_operand.vmem [shape: f32[1,128], index: 6, kind: input, shape index: {}]
  %s7 = inlined_call_operand.hbm [shape: bf16[128,128], index: 7, kind: output, shape index: {}]
  %s8 = sld [smem:[#allocation0]]
  $region61: #{tpu_custom_call.1} parent=0
    _
  %s10 = ssub.s32 1, %s8
  %s11 = scalar_select 0, %s10, %s8
  $region1: #{tpu_custom_call.1} parent=0
    #allocation2 [shape = 'u8[32768]{0}', space=vmem, size = 0x8000, scoped, tag = 'output window, operand 0']
    #allocation3 [shape = 's32[2]{0}', space=sflag, size = 0x8, scoped, tag = 'scoped memory for tpu_custom_call.1']
    %12 = vsyncpa [#allocation3], 0
    %s13 = scalar_lea.sflag [#allocation3], 1
    %14 = vsyncpa %s13, 0
    loop: start=0, step=1, limit=4
    $region2: #{tpu_custom_call.1} parent=1 // loop_pre_header
      _
    $region3: #{tpu_custom_call.1} parent=1 // loop_header
      %s16 = sphi 0, %s20
      %p17 = scmp.ge.s32.totalorder %s16, 4
      %s26 = sphi 0, %s28
      %s29 = sphi 0, %s26
      %s30 = sphi 0, %s29
      %s46 = sphi 0, %s30
      %s50 = sphi 0, %s50
      %s52 = sphi 0, %s50
      %s53 = sphi 0, %s52
      %s67 = sphi 0, %s53
      %s71 = sphi 0, %s71
      %s73 = sphi 0, %s71
      %s74 = sphi 0, %s73
      %s88 = sphi 0, %s74
      %s92 = sphi 0, %s92
      %s94 = sphi 0, %s92
      %s95 = sphi 0, %s94
      %s109 = sphi 0, %s95
      %s113 = sphi 0, %s113
      %s115 = sphi 0, %s113
      %s116 = sphi 0, %s115
      %s130 = sphi 0, %s116
      %s134 = sphi 0, %s134
      %s136 = sphi 0, %s134
      %s137 = sphi 0, %s136
      %s151 = sphi 0, %s137
      %s155 = sphi 0, %s155
      %s157 = sphi 0, %s155
      %s158 = sphi 0, %s157
      %s172 = sphi 0, %s158
      %s178 = sphi 0, %s180
      %s181 = sphi 0, %s178
      %s182 = sphi 0, %s181
      %s198 = sphi 0, %s182
    $region4: #{tpu_custom_call.1} parent=1 // loop_header_branch
      %19 = sbr.rel (%p17) target = $region8
    $region5: #{tpu_custom_call.1} parent=1 // loop_body
      %s21 = ssub.s32 %s16, 1
      %s22 = ssub.s32 %s16, 2
      %s23 = sadd.s32 %s16, 1
      %s24 = ssub.s32 %s16, %s23
      %p25 = scmp.eq.s32.totalorder %s24, 0
      %s27 = sadd.s32 %s26, 1
      %s28 = scalar_select %p25, %s26, %s27
      %p31 = pneg %p25
      %p32 = scmp.eq.s32.totalorder %s16, 1
      %p33 = por %p31, %p32
      %p34 = scmp.ne.s32.totalorder %s26, %s29
      %p35 = scmp.eq.s32.totalorder %s16, 0
      %p36 = por %p34, %p35
      %p37 = scmp.ne.s32.totalorder %s26, %s29
      %p38 = scmp.eq.s32.totalorder %s21, 1
      %p39 = por %p37, %p38
      %p40 = scmp.ne.s32.totalorder %s29, %s30
      %p41 = scmp.eq.s32.totalorder %s21, 0
      %p42 = por %p40, %p41
      %p43 = scmp.ne.s32.totalorder %s29, %s30
      %p44 = scmp.eq.s32.totalorder %s22, 1
      %p45 = por %p43, %p44
      %p47 = scmp.ne.s32.totalorder %s30, %s46
      %p48 = scmp.eq.s32.totalorder %s22, 0
      %p49 = por %p47, %p48
      %s51 = sadd.s32 %s50, 1
      %p54 = scmp.eq.s32.totalorder %s16, 1
      %p55 = scmp.ne.s32.totalorder %s50, %s52
      %p56 = scmp.eq.s32.totalorder %s16, 0
      %p57 = por %p55, %p56
      %p58 = scmp.ne.s32.totalorder %s50, %s52
      %p59 = scmp.eq.s32.totalorder %s21, 1
      %p60 = por %p58, %p59
      %p61 = scmp.ne.s32.totalorder %s52, %s53
      %p62 = scmp.eq.s32.totalorder %s21, 0
      %p63 = por %p61, %p62
      %p64 = scmp.ne.s32.totalorder %s52, %s53
      %p65 = scmp.eq.s32.totalorder %s22, 1
      %p66 = por %p64, %p65
      %p68 = scmp.ne.s32.totalorder %s53, %s67
      %p69 = scmp.eq.s32.totalorder %s22, 0
      %p70 = por %p68, %p69
      %s72 = sadd.s32 %s71, 1
      %p75 = scmp.eq.s32.totalorder %s16, 1
      %p76 = scmp.ne.s32.totalorder %s71, %s73
      %p77 = scmp.eq.s32.totalorder %s16, 0
      %p78 = por %p76, %p77
      %p79 = scmp.ne.s32.totalorder %s71, %s73
      %p80 = scmp.eq.s32.totalorder %s21, 1
      %p81 = por %p79, %p80
      %p82 = scmp.ne.s32.totalorder %s73, %s74
      %p83 = scmp.eq.s32.totalorder %s21, 0
      %p84 = por %p82, %p83
      %p85 = scmp.ne.s32.totalorder %s73, %s74
      %p86 = scmp.eq.s32.totalorder %s22, 1
      %p87 = por %p85, %p86
      %p89 = scmp.ne.s32.totalorder %s74, %s88
      %p90 = scmp.eq.s32.totalorder %s22, 0
      %p91 = por %p89, %p90
      %s93 = sadd.s32 %s92, 1
      %p96 = scmp.eq.s32.totalorder %s16, 1
      %p97 = scmp.ne.s32.totalorder %s92, %s94
      %p98 = scmp.eq.s32.totalorder %s16, 0
      %p99 = por %p97, %p98
      %p100 = scmp.ne.s32.totalorder %s92, %s94
      %p101 = scmp.eq.s32.totalorder %s21, 1
      %p102 = por %p100, %p101
      %p103 = scmp.ne.s32.totalorder %s94, %s95
      %p104 = scmp.eq.s32.totalorder %s21, 0
      %p105 = por %p103, %p104
      %p106 = scmp.ne.s32.totalorder %s94, %s95
      %p107 = scmp.eq.s32.totalorder %s22, 1
      %p108 = por %p106, %p107
      %p110 = scmp.ne.s32.totalorder %s95, %s109
      %p111 = scmp.eq.s32.totalorder %s22, 0
      %p112 = por %p110, %p111
      %s114 = sadd.s32 %s113, 1
      %p117 = scmp.eq.s32.totalorder %s16, 1
      %p118 = scmp.ne.s32.totalorder %s113, %s115
      %p119 = scmp.eq.s32.totalorder %s16, 0
      %p120 = por %p118, %p119
      %p121 = scmp.ne.s32.totalorder %s113, %s115
      %p122 = scmp.eq.s32.totalorder %s21, 1
      %p123 = por %p121, %p122
      %p124 = scmp.ne.s32.totalorder %s115, %s116
      %p125 = scmp.eq.s32.totalorder %s21, 0
      %p126 = por %p124, %p125
      %p127 = scmp.ne.s32.totalorder %s115, %s116
      %p128 = scmp.eq.s32.totalorder %s22, 1
      %p129 = por %p127, %p128
      %p131 = scmp.ne.s32.totalorder %s116, %s130
      %p132 = scmp.eq.s32.totalorder %s22, 0
      %p133 = por %p131, %p132
      %s135 = sadd.s32 %s134, 1
      %p138 = scmp.eq.s32.totalorder %s16, 1
      %p139 = scmp.ne.s32.totalorder %s134, %s136
      %p140 = scmp.eq.s32.totalorder %s16, 0
      %p141 = por %p139, %p140
      %p142 = scmp.ne.s32.totalorder %s134, %s136
      %p143 = scmp.eq.s32.totalorder %s21, 1
      %p144 = por %p142, %p143
      %p145 = scmp.ne.s32.totalorder %s136, %s137
      %p146 = scmp.eq.s32.totalorder %s21, 0
      %p147 = por %p145, %p146
      %p148 = scmp.ne.s32.totalorder %s136, %s137
      %p149 = scmp.eq.s32.totalorder %s22, 1
      %p150 = por %p148, %p149
      %p152 = scmp.ne.s32.totalorder %s137, %s151
      %p153 = scmp.eq.s32.totalorder %s22, 0
      %p154 = por %p152, %p153
      %s156 = sadd.s32 %s155, 1
      %p159 = scmp.eq.s32.totalorder %s16, 1
      %p160 = scmp.ne.s32.totalorder %s155, %s157
      %p161 = scmp.eq.s32.totalorder %s16, 0
      %p162 = por %p160, %p161
      %p163 = scmp.ne.s32.totalorder %s155, %s157
      %p164 = scmp.eq.s32.totalorder %s21, 1
      %p165 = por %p163, %p164
      %p166 = scmp.ne.s32.totalorder %s157, %s158
      %p167 = scmp.eq.s32.totalorder %s21, 0
      %p168 = por %p166, %p167
      %p169 = scmp.ne.s32.totalorder %s157, %s158
      %p170 = scmp.eq.s32.totalorder %s22, 1
      %p171 = por %p169, %p170
      %p173 = scmp.ne.s32.totalorder %s158, %s172
      %p174 = scmp.eq.s32.totalorder %s22, 0
      %p175 = por %p173, %p174
      %s176 = ssub.s32 %s16, %s23
      %p177 = scmp.eq.s32.totalorder %s176, 0
      %s179 = sadd.s32 %s178, 1
      %s180 = scalar_select %p177, %s178, %s179
      %p183 = pneg %p177
      %p184 = scmp.eq.s32.totalorder %s16, 1
      %p185 = por %p183, %p184
      %p186 = scmp.ne.s32.totalorder %s178, %s181
      %p187 = scmp.eq.s32.totalorder %s16, 0
      %p188 = por %p186, %p187
      %p189 = scmp.ne.s32.totalorder %s178, %s181
      %p190 = scmp.eq.s32.totalorder %s21, 1
      %p191 = por %p189, %p190
      %p192 = scmp.ne.s32.totalorder %s181, %s182
      %p193 = scmp.eq.s32.totalorder %s21, 0
      %p194 = por %p192, %p193
      %p195 = scmp.ne.s32.totalorder %s181, %s182
      %p196 = scmp.eq.s32.totalorder %s22, 1
      %p197 = por %p195, %p196
      %p199 = scmp.ne.s32.totalorder %s182, %s198
      %p200 = scmp.eq.s32.totalorder %s22, 0
      %p201 = por %p199, %p200
      %p202 = scmp.le.s32.totalorder 1, %s16
      %p203 = scmp.lt.s32.totalorder %s16, 3
      %p204 = pnand %p202, %p203
      %p205 = pneg %p204
      // Predicated region
      $region9: #{tpu_custom_call.1} parent=5 // pred_check
        _
      $region10: #{tpu_custom_call.1} parent=5 // pred_check_branch
        %207 = sbr.rel (%p204) target = $region12
      $region11: #{tpu_custom_call.1} parent=5 // pred_region
        %s208 = ssub.s32 %s16, 1
        // Predicated region
        $region13: #{tpu_custom_call.1} parent=11 // pred_check
          %p209 = pneg %p63
        $region14: #{tpu_custom_call.1} parent=11 // pred_check_branch
          %211 = sbr.rel (%p209) target = $region16
        $region15: #{tpu_custom_call.1} parent=11 // pred_region
          _
        $region16: #{tpu_custom_call.1} parent=11 // pred_fallthru
          _
        // Predicated region
        $region17: #{tpu_custom_call.1} parent=11 // pred_check
          %p212 = pneg %p84
        $region18: #{tpu_custom_call.1} parent=11 // pred_check_branch
          %214 = sbr.rel (%p212) target = $region20
        $region19: #{tpu_custom_call.1} parent=11 // pred_region
          _
        $region20: #{tpu_custom_call.1} parent=11 // pred_fallthru
          _
        // Predicated region
        $region21: #{tpu_custom_call.1} parent=11 // pred_check
          %p215 = pneg %p105
        $region22: #{tpu_custom_call.1} parent=11 // pred_check_branch
          %217 = sbr.rel (%p215) target = $region24
        $region23: #{tpu_custom_call.1} parent=11 // pred_region
          _
        $region24: #{tpu_custom_call.1} parent=11 // pred_fallthru
          _
        // Predicated region
        $region25: #{tpu_custom_call.1} parent=11 // pred_check
          %p218 = pneg %p126
        $region26: #{tpu_custom_call.1} parent=11 // pred_check_branch
          %220 = sbr.rel (%p218) target = $region28
        $region27: #{tpu_custom_call.1} parent=11 // pred_region
          _
        $region28: #{tpu_custom_call.1} parent=11 // pred_fallthru
          _
        // Predicated region
        $region29: #{tpu_custom_call.1} parent=11 // pred_check
          %p221 = pneg %p147
        $region30: #{tpu_custom_call.1} parent=11 // pred_check_branch
          %223 = sbr.rel (%p221) target = $region32
        $region31: #{tpu_custom_call.1} parent=11 // pred_region
          _
        $region32: #{tpu_custom_call.1} parent=11 // pred_fallthru
          _
        // Predicated region
        $region33: #{tpu_custom_call.1} parent=11 // pred_check
          %p224 = pneg %p168
        $region34: #{tpu_custom_call.1} parent=11 // pred_check_branch
          %226 = sbr.rel (%p224) target = $region36
        $region35: #{tpu_custom_call.1} parent=11 // pred_region
          _
        $region36: #{tpu_custom_call.1} parent=11 // pred_fallthru
          _
      $region12: #{tpu_custom_call.1} parent=5 // pred_fallthru
        _
      %p227 = scmp.lt.s32.totalorder %s16, 2
      // Predicated region
      $region37: #{tpu_custom_call.1} parent=5 // pred_check
        %p228 = pneg %p227
      $region38: #{tpu_custom_call.1} parent=5 // pred_check_branch
        %230 = sbr.rel (%p228) target = $region40
      $region39: #{tpu_custom_call.1} parent=5 // pred_region
        // Predicated region
        $region41: #{tpu_custom_call.1} parent=39 // pred_check
          %p231 = pneg %p36
        $region42: #{tpu_custom_call.1} parent=39 // pred_check_branch
          %233 = sbr.rel (%p231) target = $region44
        $region43: #{tpu_custom_call.1} parent=39 // pred_region
          %s234 = smul.u32 8, %s16
          %p235 = scmp.lt.s32.totalorder %s234, 15
          %s236 = scalar_select %p235, %s234, 15
          %s237 = smul.addr %s236, 8
          %s238 = scalar_lea.vmem %s0, %s237
          %s239 = smul.u32 8, %s16
        $region44: #{tpu_custom_call.1} parent=39 // pred_fallthru
          _
      $region40: #{tpu_custom_call.1} parent=5 // pred_fallthru
        _
      %p240 = scmp.le.s32.totalorder 1, %s16
      %p241 = scmp.lt.s32.totalorder %s16, 3
      %p242 = pnand %p240, %p241
      %p243 = pneg %p242
      // Predicated region
      $region45: #{tpu_custom_call.1} parent=5 // pred_check
        _
      $region46: #{tpu_custom_call.1} parent=5 // pred_check_branch
        %245 = sbr.rel (%p242) target = $region48
      $region47: #{tpu_custom_call.1} parent=5 // pred_region
        %s246 = ssub.s32 %s16, 1
        %s247 = smul.u32 8, %s21
        %p248 = scmp.lt.s32.totalorder %s247, 15
        %s249 = scalar_select %p248, %s247, 15
        %s250 = smul.addr %s249, 8
        %s251 = scalar_lea.vmem %s0, %s250
        %p252 = pneg %p42
        %p253 = pneg %p39
        %p254 = pneg %p63
        %p255 = pneg %p60
        %p256 = pneg %p84
        %p257 = pneg %p81
        %p258 = pneg %p105
        %p259 = pneg %p102
        %p260 = pneg %p126
        %p261 = pneg %p123
        %p262 = pneg %p147
        %p263 = pneg %p144
        %p264 = pneg %p168
        %p265 = pneg %p165
        %p266 = pneg %p194
        %p267 = pneg %p191
        %s268 = sand.u32 %s181, 1
        %s269 = scalar_lea.sflag [#allocation3], %s268
        %s270 = sand.u32 %s181, 1
        %s271 = smul.addr %s270, 32
        %s272 = scalar_lea.vmem [#allocation2], %s271
        %s273 = smul.u32 8, %s21
        %p274 = scmp.lt.s32.totalorder %s273, 15
        %s275 = scalar_select %p274, %s273, 15
        %s276 = smul.addr %s275, 8
        %s277 = scalar_lea.vmem %s0, %s276
        %s278 = smul.u32 8, %s21
        %s279 = smul.u32 8, %s21
        %v281 = vld [vmem:[%s277] sm:$0xff]
        %v282 = vld [vmem:[%s277 + $0x8] sm:$0xff]
        %v283 = vld [vmem:[%s277 + $0x10] sm:$0xff]
        %v284 = vld [vmem:[%s277 + $0x18] sm:$0xff]
        %v285 = vld [vmem:[%s277 + $0x20] sm:$0xff]
        %v286 = vld [vmem:[%s277 + $0x28] sm:$0xff]
        %v287 = vld [vmem:[%s277 + $0x30] sm:$0xff]
        %v288 = vld [vmem:[%s277 + $0x38] sm:$0xff]
        %v289 = vpack.c.bf16 %v282, %v281
        %v290 = vpack.c.bf16 %v284, %v283
        %v291 = vpack.c.bf16 %v286, %v285
        %v292 = vpack.c.bf16 %v288, %v287
        %v293 = vld [vmem:[%s1] sm:$0xf]
        %v294 = vld [vmem:[%s1 + $0x4] sm:$0xf]
        %v295 = vld [vmem:[%s2] sm:$0x1]
        %v297 = vlaneseq
        %v298 = vshrl.u32 %v297, 7
        %v299 = vsub.s32 0, %v298
        %v300 = vrot.slane %v295, %v299
        %v304 = vunpack.c.l.b16 %v293
        %v305 = vunpack.c.l.b16 %v294
        %v306 = vpack.c.b16 %v305, %v304
        %vm308 = vcmask 130048
        %v310 = vsel %vm308, %v289, 0
        %v313 = vsel %vm308, %v290, 0
        %v316 = vsel %vm308, %v291, 0
        %v319 = vsel %vm308, %v292, 0
        %321 = vmatprep.subr.bf16.mxu0 0
        %322 = vmatpush1.bf16.msra.mxu0 0
        %323 = vmatprep.subr.bf16.mxu0 0
        %324 = vmatpush1.bf16.msra.mxu0 0
        %325 = vmatprep.subr.bf16.mxu0 0
        %326 = vmatpush1.bf16.msra.mxu0 0
        %327 = vmatprep.subr.bf16.mxu0 0
        %328 = vmatpush1.bf16.msra.mxu0 0
        %329 = vmatprep.subr.bf16.mxu0 0
        %330 = vmatpush1.bf16.msra.mxu0 0
        %331 = vmatprep.subr.bf16.mxu0 0
        %332 = vmatpush1.bf16.msra.mxu0 0
        %333 = vmatprep.subr.bf16.mxu0 0
        %334 = vmatpush1.bf16.msra.mxu0 0
        %335 = vmatprep.subr.bf16.mxu0 0
        %336 = vmatpush1.bf16.msra.mxu0 %v306
        %337 = vmatprep.subr.bf16.mxu0 0
        %338 = vmatpush2.bf16.msra.mxu0 0
        %339 = vmatprep.subr.bf16.mxu0 0
        %340 = vmatpush2.bf16.msra.mxu0 0
        %341 = vmatprep.subr.bf16.mxu0 0
        %342 = vmatpush2.bf16.msra.mxu0 0
        %343 = vmatprep.subr.bf16.mxu0 0
        %344 = vmatpush2.bf16.msra.mxu0 0
        %345 = vmatprep.subr.bf16.mxu0 0
        %346 = vmatpush2.bf16.msra.mxu0 0
        %347 = vmatprep.subr.bf16.mxu0 0
        %348 = vmatpush2.bf16.msra.mxu0 0
        %349 = vmatprep.subr.bf16.mxu0 0
        %350 = vmatpush2.bf16.msra.mxu0 0
        %351 = vmatprep.subr.bf16.mxu0 0
        %352 = vmatpush2.bf16.msra.mxu0 0
        %353 = vmatprep.mubr.bf16.mxu0 0
        %354 = vmatmul.mubr.bf16.gmra.mxu0 %v310
        %v355 = vpop.f32.mrf.mxu0
        %v356 = vadd.f32 %v300, %v355
        %v357 = vpop.f32.mrf.mxu0
        %v358 = vpop.f32.mrf.mxu0
        %v359 = vadd.f32 %v300, %v358
        %v360 = vpop.f32.mrf.mxu0
        %361 = vmatprep.mubr.bf16.mxu0 0
        %362 = vmatmul.mubr.bf16.gmra.mxu0 %v313
        %v363 = vpop.f32.mrf.mxu0
        %v364 = vadd.f32 %v300, %v363
        %v365 = vpop.f32.mrf.mxu0
        %v366 = vpop.f32.mrf.mxu0
        %v367 = vadd.f32 %v300, %v366
        %v368 = vpop.f32.mrf.mxu0
        %369 = vmatprep.mubr.bf16.mxu0 0
        %370 = vmatmul.mubr.bf16.gmra.mxu0 %v316
        %v371 = vpop.f32.mrf.mxu0
        %v372 = vadd.f32 %v300, %v371
        %v373 = vpop.f32.mrf.mxu0
        %v374 = vpop.f32.mrf.mxu0
        %v375 = vadd.f32 %v300, %v374
        %v376 = vpop.f32.mrf.mxu0
        %377 = vmatprep.mubr.bf16.mxu0 0
        %378 = vmatmul.mubr.bf16.gmra.mxu0 %v319
        %v379 = vpop.f32.mrf.mxu0
        %v380 = vadd.f32 %v300, %v379
        %v381 = vpop.f32.mrf.mxu0
        %v382 = vpop.f32.mrf.mxu0
        %v383 = vadd.f32 %v300, %v382
        %v384 = vpop.f32.mrf.mxu0
        %385 = vdwg.mxu0
        %v386 = vmax.f32 %v356, 0.0
        %v387 = vmax.f32 %v359, 0.0
        %v388 = vmax.f32 %v364, 0.0
        %v389 = vmax.f32 %v367, 0.0
        %v390 = vmax.f32 %v372, 0.0
        %v391 = vmax.f32 %v375, 0.0
        %v392 = vmax.f32 %v380, 0.0
        %v393 = vmax.f32 %v383, 0.0
        %v394 = vpack.c.bf16 %v387, %v386
        %v395 = vpack.c.bf16 %v389, %v388
        %v396 = vpack.c.bf16 %v391, %v390
        %v397 = vpack.c.bf16 %v393, %v392
        %v398 = vld [vmem:[%s3] sm:$0xf]
        %v399 = vld [vmem:[%s3 + $0x4] sm:$0xf]
        %v400 = vld [vmem:[%s3 + $0x8] sm:$0xf]
        %v401 = vld [vmem:[%s3 + $0xc] sm:$0xf]
        %v402 = vld [vmem:[%s3 + $0x10] sm:$0xf]
        %v403 = vld [vmem:[%s3 + $0x14] sm:$0xf]
        %v404 = vld [vmem:[%s3 + $0x18] sm:$0xf]
        %v405 = vld [vmem:[%s3 + $0x1c] sm:$0xf]
        %v406 = vld [vmem:[%s3 + $0x20] sm:$0xf]
        %v407 = vld [vmem:[%s3 + $0x24] sm:$0xf]
        %v408 = vld [vmem:[%s3 + $0x28] sm:$0xf]
        %v409 = vld [vmem:[%s3 + $0x2c] sm:$0xf]
        %v410 = vld [vmem:[%s3 + $0x30] sm:$0xf]
        %v411 = vld [vmem:[%s3 + $0x34] sm:$0xf]
        %v412 = vld [vmem:[%s3 + $0x38] sm:$0xf]
        %v413 = vld [vmem:[%s3 + $0x3c] sm:$0xf]
        %v414 = vld [vmem:[%s4] sm:$0x1]
        %v416 = vlaneseq
        %v417 = vshrl.u32 %v416, 7
        %v418 = vsub.s32 0, %v417
        %v419 = vrot.slane %v414, %v418
        %v437 = vunpack.c.l.b16 %v398
        %v438 = vunpack.c.l.b16 %v399
        %v439 = vunpack.c.l.b16 %v400
        %v440 = vunpack.c.l.b16 %v401
        %v441 = vunpack.c.l.b16 %v402
        %v442 = vunpack.c.l.b16 %v403
        %v443 = vunpack.c.l.b16 %v404
        %v444 = vunpack.c.l.b16 %v405
        %v445 = vunpack.c.l.b16 %v406
        %v446 = vunpack.c.l.b16 %v407
        %v447 = vunpack.c.l.b16 %v408
        %v448 = vunpack.c.l.b16 %v409
        %v449 = vunpack.c.l.b16 %v410
        %v450 = vunpack.c.l.b16 %v411
        %v451 = vunpack.c.l.b16 %v412
        %v452 = vunpack.c.l.b16 %v413
        %v453 = vpack.c.b16 %v438, %v437
        %v454 = vpack.c.b16 %v440, %v439
        %v455 = vpack.c.b16 %v442, %v441
        %v456 = vpack.c.b16 %v444, %v443
        %v457 = vpack.c.b16 %v446, %v445
        %v458 = vpack.c.b16 %v448, %v447
        %v459 = vpack.c.b16 %v450, %v449
        %v460 = vpack.c.b16 %v452, %v451
        %469 = vmatprep.subr.bf16.mxu0 0
        %470 = vmatpush1.bf16.msra.mxu0 %v460
        %471 = vmatprep.subr.bf16.mxu0 0
        %472 = vmatpush1.bf16.msra.mxu0 %v459
        %473 = vmatprep.subr.bf16.mxu0 0
        %474 = vmatpush1.bf16.msra.mxu0 %v458
        %475 = vmatprep.subr.bf16.mxu0 0
        %476 = vmatpush1.bf16.msra.mxu0 %v457
        %477 = vmatprep.subr.bf16.mxu0 0
        %478 = vmatpush1.bf16.msra.mxu0 %v456
        %479 = vmatprep.subr.bf16.mxu0 0
        %480 = vmatpush1.bf16.msra.mxu0 %v455
        %481 = vmatprep.subr.bf16.mxu0 0
        %482 = vmatpush1.bf16.msra.mxu0 %v454
        %483 = vmatprep.subr.bf16.mxu0 0
        %484 = vmatpush1.bf16.msra.mxu0 %v453
        %485 = vmatprep.subr.bf16.mxu0 0
        %486 = vmatpush2.bf16.msra.mxu0 0
        %487 = vmatprep.subr.bf16.mxu0 0
        %488 = vmatpush2.bf16.msra.mxu0 0
        %489 = vmatprep.subr.bf16.mxu0 0
        %490 = vmatpush2.bf16.msra.mxu0 0
        %491 = vmatprep.subr.bf16.mxu0 0
        %492 = vmatpush2.bf16.msra.mxu0 0
        %493 = vmatprep.subr.bf16.mxu0 0
        %494 = vmatpush2.bf16.msra.mxu0 0
        %495 = vmatprep.subr.bf16.mxu0 0
        %496 = vmatpush2.bf16.msra.mxu0 0
        %497 = vmatprep.subr.bf16.mxu0 0
        %498 = vmatpush2.bf16.msra.mxu0 0
        %499 = vmatprep.subr.bf16.mxu0 0
        %500 = vmatpush2.bf16.msra.mxu0 0
        %501 = vmatprep.mubr.bf16.mxu0 0
        %502 = vmatmul.mubr.bf16.gmra.mxu0 %v394
        %v503 = vpop.f32.mrf.mxu0
        %v504 = vadd.f32 %v419, %v503
        %v505 = vpop.f32.mrf.mxu0
        %v506 = vpop.f32.mrf.mxu0
        %v507 = vadd.f32 %v419, %v506
        %v508 = vpop.f32.mrf.mxu0
        %509 = vmatprep.mubr.bf16.mxu0 0
        %510 = vmatmul.mubr.bf16.gmra.mxu0 %v395
        %v511 = vpop.f32.mrf.mxu0
        %v512 = vadd.f32 %v419, %v511
        %v513 = vpop.f32.mrf.mxu0
        %v514 = vpop.f32.mrf.mxu0
        %v515 = vadd.f32 %v419, %v514
        %v516 = vpop.f32.mrf.mxu0
        %517 = vmatprep.mubr.bf16.mxu0 0
        %518 = vmatmul.mubr.bf16.gmra.mxu0 %v396
        %v519 = vpop.f32.mrf.mxu0
        %v520 = vadd.f32 %v419, %v519
        %v521 = vpop.f32.mrf.mxu0
        %v522 = vpop.f32.mrf.mxu0
        %v523 = vadd.f32 %v419, %v522
        %v524 = vpop.f32.mrf.mxu0
        %525 = vmatprep.mubr.bf16.mxu0 0
        %526 = vmatmul.mubr.bf16.gmra.mxu0 %v397
        %v527 = vpop.f32.mrf.mxu0
        %v528 = vadd.f32 %v419, %v527
        %v529 = vpop.f32.mrf.mxu0
        %v530 = vpop.f32.mrf.mxu0
        %v531 = vadd.f32 %v419, %v530
        %v532 = vpop.f32.mrf.mxu0
        %533 = vdwg.mxu0
        %v534 = vmax.f32 %v504, 0.0
        %v535 = vmax.f32 %v507, 0.0
        %v536 = vmax.f32 %v512, 0.0
        %v537 = vmax.f32 %v515, 0.0
        %v538 = vmax.f32 %v520, 0.0
        %v539 = vmax.f32 %v523, 0.0
        %v540 = vmax.f32 %v528, 0.0
        %v541 = vmax.f32 %v531, 0.0
        %v542 = vpack.c.bf16 %v535, %v534
        %v543 = vpack.c.bf16 %v537, %v536
        %v544 = vpack.c.bf16 %v539, %v538
        %v545 = vpack.c.bf16 %v541, %v540
        %v546 = vld [vmem:[%s5] sm:$0xf]
        %v547 = vld [vmem:[%s5 + $0x4] sm:$0xf]
        %v548 = vld [vmem:[%s5 + $0x8] sm:$0xf]
        %v549 = vld [vmem:[%s5 + $0xc] sm:$0xf]
        %v550 = vld [vmem:[%s5 + $0x10] sm:$0xf]
        %v551 = vld [vmem:[%s5 + $0x14] sm:$0xf]
        %v552 = vld [vmem:[%s5 + $0x18] sm:$0xf]
        %v553 = vld [vmem:[%s5 + $0x1c] sm:$0xf]
        %v554 = vld [vmem:[%s5 + $0x20] sm:$0xf]
        %v555 = vld [vmem:[%s5 + $0x24] sm:$0xf]
        %v556 = vld [vmem:[%s5 + $0x28] sm:$0xf]
        %v557 = vld [vmem:[%s5 + $0x2c] sm:$0xf]
        %v558 = vld [vmem:[%s5 + $0x30] sm:$0xf]
        %v559 = vld [vmem:[%s5 + $0x34] sm:$0xf]
        %v560 = vld [vmem:[%s5 + $0x38] sm:$0xf]
        %v561 = vld [vmem:[%s5 + $0x3c] sm:$0xf]
        %v562 = vld [vmem:[%s6] sm:$0x1]
        %v564 = vlaneseq
        %v565 = vshrl.u32 %v564, 7
        %v566 = vsub.s32 0, %v565
        %v567 = vrot.slane %v562, %v566
        %v585 = vunpack.c.l.b16 %v546
        %v586 = vunpack.c.l.b16 %v547
        %v587 = vunpack.c.l.b16 %v548
        %v588 = vunpack.c.l.b16 %v549
        %v589 = vunpack.c.l.b16 %v550
        %v590 = vunpack.c.l.b16 %v551
        %v591 = vunpack.c.l.b16 %v552
        %v592 = vunpack.c.l.b16 %v553
        %v593 = vunpack.c.l.b16 %v554
        %v594 = vunpack.c.l.b16 %v555
        %v595 = vunpack.c.l.b16 %v556
        %v596 = vunpack.c.l.b16 %v557
        %v597 = vunpack.c.l.b16 %v558
        %v598 = vunpack.c.l.b16 %v559
        %v599 = vunpack.c.l.b16 %v560
        %v600 = vunpack.c.l.b16 %v561
        %v601 = vpack.c.b16 %v586, %v585
        %v602 = vpack.c.b16 %v588, %v587
        %v603 = vpack.c.b16 %v590, %v589
        %v604 = vpack.c.b16 %v592, %v591
        %v605 = vpack.c.b16 %v594, %v593
        %v606 = vpack.c.b16 %v596, %v595
        %v607 = vpack.c.b16 %v598, %v597
        %v608 = vpack.c.b16 %v600, %v599
        %617 = vmatprep.subr.bf16.mxu0 0
        %618 = vmatpush1.bf16.msra.mxu0 %v608
        %619 = vmatprep.subr.bf16.mxu0 0
        %620 = vmatpush1.bf16.msra.mxu0 %v607
        %621 = vmatprep.subr.bf16.mxu0 0
        %622 = vmatpush1.bf16.msra.mxu0 %v606
        %623 = vmatprep.subr.bf16.mxu0 0
        %624 = vmatpush1.bf16.msra.mxu0 %v605
        %625 = vmatprep.subr.bf16.mxu0 0
        %626 = vmatpush1.bf16.msra.mxu0 %v604
        %627 = vmatprep.subr.bf16.mxu0 0
        %628 = vmatpush1.bf16.msra.mxu0 %v603
        %629 = vmatprep.subr.bf16.mxu0 0
        %630 = vmatpush1.bf16.msra.mxu0 %v602
        %631 = vmatprep.subr.bf16.mxu0 0
        %632 = vmatpush1.bf16.msra.mxu0 %v601
        %633 = vmatprep.subr.bf16.mxu0 0
        %634 = vmatpush2.bf16.msra.mxu0 0
        %635 = vmatprep.subr.bf16.mxu0 0
        %636 = vmatpush2.bf16.msra.mxu0 0
        %637 = vmatprep.subr.bf16.mxu0 0
        %638 = vmatpush2.bf16.msra.mxu0 0
        %639 = vmatprep.subr.bf16.mxu0 0
        %640 = vmatpush2.bf16.msra.mxu0 0
        %641 = vmatprep.subr.bf16.mxu0 0
        %642 = vmatpush2.bf16.msra.mxu0 0
        %643 = vmatprep.subr.bf16.mxu0 0
        %644 = vmatpush2.bf16.msra.mxu0 0
        %645 = vmatprep.subr.bf16.mxu0 0
        %646 = vmatpush2.bf16.msra.mxu0 0
        %647 = vmatprep.subr.bf16.mxu0 0
        %648 = vmatpush2.bf16.msra.mxu0 0
        %649 = vmatprep.mubr.bf16.mxu0 0
        %650 = vmatmul.mubr.bf16.gmra.mxu0 %v542
        %v651 = vpop.f32.mrf.mxu0
        %v652 = vadd.f32 %v567, %v651
        %v653 = vpop.f32.mrf.mxu0
        %v654 = vpop.f32.mrf.mxu0
        %v655 = vadd.f32 %v567, %v654
        %v656 = vpop.f32.mrf.mxu0
        %657 = vmatprep.mubr.bf16.mxu0 0
        %658 = vmatmul.mubr.bf16.gmra.mxu0 %v543
        %v659 = vpop.f32.mrf.mxu0
        %v660 = vadd.f32 %v567, %v659
        %v661 = vpop.f32.mrf.mxu0
        %v662 = vpop.f32.mrf.mxu0
        %v663 = vadd.f32 %v567, %v662
        %v664 = vpop.f32.mrf.mxu0
        %665 = vmatprep.mubr.bf16.mxu0 0
        %666 = vmatmul.mubr.bf16.gmra.mxu0 %v544
        %v667 = vpop.f32.mrf.mxu0
        %v668 = vadd.f32 %v567, %v667
        %v669 = vpop.f32.mrf.mxu0
        %v670 = vpop.f32.mrf.mxu0
        %v671 = vadd.f32 %v567, %v670
        %v672 = vpop.f32.mrf.mxu0
        %673 = vmatprep.mubr.bf16.mxu0 0
        %674 = vmatmul.mubr.bf16.gmra.mxu0 %v545
        %v675 = vpop.f32.mrf.mxu0
        %v676 = vadd.f32 %v567, %v675
        %v677 = vpop.f32.mrf.mxu0
        %v678 = vpop.f32.mrf.mxu0
        %v679 = vadd.f32 %v567, %v678
        %v680 = vpop.f32.mrf.mxu0
        %681 = vdwg.mxu0
        %v682 = vpack.c.bf16 %v655, %v652
        %v683 = vpack.c.bf16 %v663, %v660
        %v684 = vpack.c.bf16 %v671, %v668
        %v685 = vpack.c.bf16 %v679, %v676
        %v690 = vunpack.c.l.b16 %v682
        %v691 = vunpack.c.h.b16 %v682
        %v692 = vunpack.c.l.b16 %v683
        %v693 = vunpack.c.h.b16 %v683
        %v694 = vunpack.c.l.b16 %v684
        %v695 = vunpack.c.h.b16 %v684
        %v696 = vunpack.c.l.b16 %v685
        %v697 = vunpack.c.h.b16 %v685
        %v698 = vpack.c.b16 %v690, %v690
        %v699 = vpack.c.b16 %v691, %v691
        %v700 = vpack.c.b16 %v692, %v692
        %v701 = vpack.c.b16 %v693, %v693
        %v702 = vpack.c.b16 %v694, %v694
        %v703 = vpack.c.b16 %v695, %v695
        %v704 = vpack.c.b16 %v696, %v696
        %v705 = vpack.c.b16 %v697, %v697
        %714 = vst [vmem:[%s272] sm:$0xf] %v698
        %715 = vst [vmem:[%s272 + $0x4] sm:$0xf] %v699
        %716 = vst [vmem:[%s272 + $0x8] sm:$0xf] %v700
        %717 = vst [vmem:[%s272 + $0xc] sm:$0xf] %v701
        %718 = vst [vmem:[%s272 + $0x10] sm:$0xf] %v702
        %719 = vst [vmem:[%s272 + $0x14] sm:$0xf] %v703
        %720 = vst [vmem:[%s272 + $0x18] sm:$0xf] %v704
        %721 = vst [vmem:[%s272 + $0x1c] sm:$0xf] %v705
        %s722 = sand.u32 %s181, 1
        %s723 = scalar_lea.sflag [#allocation3], %s722
        %s724 = sand.u32 %s181, 1
        %s725 = smul.addr %s724, 32
        %s726 = scalar_lea.vmem [#allocation2], %s725
        // Predicated region
        $region49: #{tpu_custom_call.1} parent=47 // pred_check
          %p727 = pneg %p191
        $region50: #{tpu_custom_call.1} parent=47 // pred_check_branch
          %729 = sbr.rel (%p727) target = $region52
        $region51: #{tpu_custom_call.1} parent=47 // pred_region
          %s730 = smul.u32 8, %s21
          %s732 = ssub.s32 512, 512
          %733 = vsyncadd %s723, %s732
          %s734 = smul.addr %s730, 64
          %s735 = scalar_lea.hbm %s7, %s734
          %s736 = sshll.u32 %s726, 4
          %s737 = int_to_ptr.vmem [resolvable:$true] %s736
          %742 = dma.vmem_to_hbm [thread:$0]  %s737, 512, %s735, %s723, 64, 64, 4
        $region52: #{tpu_custom_call.1} parent=47 // pred_fallthru
          _
      $region48: #{tpu_custom_call.1} parent=5 // pred_fallthru
        _
      %p743 = scmp.le.s32.totalorder 2, %s16
      // Predicated region
      $region53: #{tpu_custom_call.1} parent=5 // pred_check
        %p744 = pneg %p743
      $region54: #{tpu_custom_call.1} parent=5 // pred_check_branch
        %746 = sbr.rel (%p744) target = $region56
      $region55: #{tpu_custom_call.1} parent=5 // pred_region
        %s747 = ssub.s32 %s16, 2
        // Predicated region
        $region57: #{tpu_custom_call.1} parent=55 // pred_check
          %p748 = pneg %p197
        $region58: #{tpu_custom_call.1} parent=55 // pred_check_branch
          %750 = sbr.rel (%p748) target = $region60
        $region59: #{tpu_custom_call.1} parent=55 // pred_region
          %s751 = sand.u32 %s182, 1
          %s752 = scalar_lea.sflag [#allocation3], %s751
          %s753 = sand.u32 %s182, 1
          %s754 = smul.addr %s753, 32
          %s755 = scalar_lea.vmem [#allocation2], %s754
          %756 = dma.done %s752, 512
        $region60: #{tpu_custom_call.1} parent=55 // pred_fallthru
          _
      $region56: #{tpu_custom_call.1} parent=5 // pred_fallthru
        _
    $region6: #{tpu_custom_call.1} parent=1 // loop_footer
      %s20 = sadd.s32 1, %s16
    $region7: #{tpu_custom_call.1} parent=1 // loop_footer_branch
      %15 = sbr.rel target = $region3
    $region8: #{tpu_custom_call.1} parent=1 // loop_exit
      _
    %757 = vsyncpa [#allocation3], 1
    %s758 = scalar_lea.sflag [#allocation3], 1
    %759 = vsyncpa %s758, 1

</llo_original>
